<compile_context>
chip_gen: v7x
topology: tpu7x:2x2x1
jax: 0.10.0
libtpu: 0.0.40
codegen_flags: <defaults>
</compile_context>

<pallas_src>
import jax
import jax.numpy as jnp
from jax.experimental import pallas as pl
from jax.experimental.pallas import tpu as pltpu

_LANES = 128


def _mish_kernel(x_ref, o_ref):
    # tanh(softplus(x)) = ((1+e)^2 - 1) / ((1+e)^2 + 1) = num / (num + 2),
    # num = e*(e+2), e = exp(x).  One EUP exp + one exact divide per element.
    # With the clamp at 20, num ~ 2.4e17 for x >= 20 so num/(num+2) == 1.0 in
    # f32 and x*t == x bit-exactly -> PyTorch's softplus threshold is matched
    # without a compare/select.
    x = x_ref[...].astype(jnp.float32)
    e = jnp.exp(jnp.minimum(x, 20.0))
    num = e * (e + 2.0)
    t = num / (num + 2.0)
    o_ref[...] = (x * t).astype(o_ref.dtype)


def _mish_jnp(x):
    # Same math as the kernel; used for small inputs and the misaligned tail.
    xf = x.astype(jnp.float32)
    e = jnp.exp(jnp.minimum(xf, 20.0))
    num = e * (e + 2.0)
    return (xf * (num / (num + 2.0))).astype(x.dtype)


def _sublane_multiple(dtype) -> int:
    # Sub-32-bit dtypes pack along sublanes: 8 rows (f32), 16 (bf16), 32 (int8).
    return max(8, 32 // jnp.dtype(dtype).itemsize)


def _mish_2d(x2d: jax.Array, *, target_block_bytes: int) -> jax.Array:
    rows, lanes = x2d.shape
    dtype = x2d.dtype
    itemsize = jnp.dtype(dtype).itemsize
    sub = _sublane_multiple(dtype)

    # ~target_block_bytes of rows per block, rounded to the sublane multiple.
    target_rows = max(sub, (target_block_bytes // (lanes * itemsize)) // sub * sub)
    # Guarantee >= 2 grid steps whenever there is enough data so the "parallel"
    # axis can occupy both TensorCores on v7x (harmless on 1-TC v5e/v6e; the
    # ~0.35us per-step overhead is negligible at these block sizes).
    if rows > 2 * sub:
        half = pl.cdiv(pl.cdiv(rows, 2), sub) * sub
        target_rows = min(target_rows, half)
    block_rows = min(rows, target_rows)

    grid = (pl.cdiv(rows, block_rows),)
    return pl.pallas_call(
        _mish_kernel,
        out_shape=jax.ShapeDtypeStruct((rows, lanes), dtype),
        grid_spec=pltpu.PrefetchScalarGridSpec(
            num_scalar_prefetch=0,
            grid=grid,
            in_specs=[pl.BlockSpec((block_rows, lanes), lambda i: (i, 0))],
            out_specs=pl.BlockSpec((block_rows, lanes), lambda i: (i, 0)),
        ),
        compiler_params=pltpu.CompilerParams(
            dimension_semantics=("parallel",),  # lets v7x shard across both TCs
        ),
    )(x2d)


def mish(x: jax.Array, *, target_block_bytes: int = 2 << 20,
         min_pallas_elements: int = 1 << 16) -> jax.Array:
    """Elementwise Mish.

    Tensors below `min_pallas_elements` (default 64K elements, e.g. the tiny
    A3C conv activations) use a plain-jnp expression so XLA fuses it into the
    producer instead of paying pallas_call/DMA fixed costs and an extra HBM
    round trip.  Larger tensors are viewed as a lane-dense (rows, 128) slab
    (metadata-only reshape for the 128-aligned bulk) and streamed through the
    Pallas kernel in ~2 MiB double-buffered blocks.
    """
    orig_shape = x.shape
    n = x.size
    if n == 0:
        return x
    if n < max(min_pallas_elements, _LANES):
        return _mish_jnp(x)

    x_flat = jnp.ravel(x)
    rem = n % _LANES
    if rem == 0:
        out_flat = _mish_2d(
            x_flat.reshape(n // _LANES, _LANES),
            target_block_bytes=target_block_bytes,
        ).reshape(-1)
    else:
        # Lane-misaligned total size: kernel over the aligned bulk only; the
        # <=127-element tail is done in jnp.  No full-array pad/unpad passes.
        # TODO(synk): drop the concatenate pass for very large misaligned
        # tensors via input_output_aliases + a masked tail store.
        n_bulk = n - rem
        bulk = _mish_2d(
            x_flat[:n_bulk].reshape(n_bulk // _LANES, _LANES),
            target_block_bytes=target_block_bytes,
        ).reshape(-1)
        tail = _mish_jnp(x_flat[n_bulk:])
        out_flat = jnp.concatenate([bulk, tail])
    return out_flat.reshape(orig_shape)


def _mish_ref(x):
    # Pure-JAX reference matching PyTorch semantics (softplus threshold=20).
    xf = x.astype(jnp.float32)
    sp = jnp.where(xf > 20.0, xf, jnp.log1p(jnp.exp(jnp.minimum(xf, 20.0))))
    return (xf * jnp.tanh(sp)).astype(x.dtype)


if __name__ == "__main__":
    key = jax.random.PRNGKey(0)

    # Primary A3C conv-activation shape (NCHW).  Force the Pallas path so the
    # kernel itself is exercised at this shape; the default wrapper would use
    # the fused-jnp small-input fallback here (the faster choice in practice).
    x = jax.random.normal(key, (2, 4, 16, 16), dtype=jnp.float32)
    out = jax.block_until_ready(mish(x, min_pallas_elements=0))
    ref = _mish_ref(x)
    assert out.shape == x.shape and out.dtype == x.dtype
    assert jnp.allclose(out, ref, atol=2e-6, rtol=2e-6), "mismatch vs reference"

    # Default path at the same shape (small-input fallback).
    out_d = jax.block_until_ready(mish(x))
    assert jnp.allclose(out_d, ref, atol=2e-6, rtol=2e-6), "fallback mismatch"

    # Larger tensor: multi-step grid through the Pallas kernel (default path).
    x_big = jax.random.normal(jax.random.PRNGKey(1), (4, 16, 64, 64),
                              dtype=jnp.float32) * 4.0
    out_big = jax.block_until_ready(mish(x_big))
    assert jnp.allclose(out_big, _mish_ref(x_big), atol=2e-6, rtol=2e-6), \
        "mismatch (large)"

    # Lane-misaligned element count through the bulk+tail Pallas path (forced).
    x_odd = jax.random.normal(jax.random.PRNGKey(2), (3, 5, 7, 11),
                              dtype=jnp.float32) * 4.0
    out_odd = jax.block_until_ready(mish(x_odd, min_pallas_elements=0))
    assert jnp.allclose(out_odd, _mish_ref(x_odd), atol=2e-6, rtol=2e-6), \
        "mismatch (misaligned)"

    # Edge cases around the PyTorch softplus threshold (x > 20 -> linear).
    xe = jnp.array([-30.0, -10.0, -1.0, 0.0, 1.0, 19.9, 20.0, 20.1, 30.0, 50.0],
                   dtype=jnp.float32)
    out_e = jax.block_until_ready(mish(xe))
    assert jnp.allclose(out_e, _mish_ref(xe), atol=2e-6, rtol=2e-6), \
        "mismatch (threshold edges)"

    print("KERNEL_OK")
</pallas_src>

<mosaic_0001>
module attributes {stable_mosaic.version = 11 : i64} {
  func.func @_mish_kernel(%arg0: i32, %arg1: memref<16x128xf32, #tpu.memory_space<vmem>>, %arg2: memref<16x128xf32, #tpu.memory_space<vmem>>) attributes {dimension_semantics = [#tpu.dimension_semantics<parallel>], iteration_bounds = array<i64: 1>, scalar_prefetch = 0 : i64, scratch_operands = 0 : i64, tpu.core_type = #tpu.core_type<tc>, window_params = [{transform_indices = @transform_0, window_bounds = array<i64: 16, 128>}, {transform_indices = @transform_1, window_bounds = array<i64: 16, 128>}]} {
    %c0 = arith.constant 0 : index
    %c0_0 = arith.constant 0 : index
    %0 = vector.load %arg1[%c0, %c0_0] : memref<16x128xf32, #tpu.memory_space<vmem>>, vector<16x128xf32>
    %cst = arith.constant 2.000000e+01 : f32
    %1 = vector.broadcast %cst : f32 to vector<16x128xf32>
    %2 = arith.minimumf %0, %1 : vector<16x128xf32>
    %3 = math.exp %2 : vector<16x128xf32>
    %cst_1 = arith.constant 2.000000e+00 : f32
    %4 = vector.broadcast %cst_1 : f32 to vector<16x128xf32>
    %5 = arith.addf %3, %4 : vector<16x128xf32>
    %6 = arith.mulf %3, %5 : vector<16x128xf32>
    %cst_2 = arith.constant 2.000000e+00 : f32
    %7 = vector.broadcast %cst_2 : f32 to vector<16x128xf32>
    %8 = arith.addf %6, %7 : vector<16x128xf32>
    %9 = arith.divf %6, %8 : vector<16x128xf32>
    %10 = arith.mulf %0, %9 : vector<16x128xf32>
    %c0_3 = arith.constant 0 : index
    %c0_4 = arith.constant 0 : index
    %11 = vector.load %arg2[%c0_3, %c0_4] : memref<16x128xf32, #tpu.memory_space<vmem>>, vector<16x128xf32>
    tpu.vector_store %arg2[%c0_3, %c0_4], %10 {strides = array<i32>} : memref<16x128xf32, #tpu.memory_space<vmem>>, vector<16x128xf32>,
    return
  }
  func.func @transform_0(%arg0: i32) -> (i32, i32) {
    %c0_i32 = arith.constant 0 : i32
    %c0_i32_0 = arith.constant 0 : i32
    return %arg0, %c0_i32 : i32, i32
  }
  func.func @transform_1(%arg0: i32) -> (i32, i32) {
    %c0_i32 = arith.constant 0 : i32
    %c0_i32_0 = arith.constant 0 : i32
    return %arg0, %c0_i32 : i32, i32
  }
}

</mosaic_0001>

<llo_original>
// kernel: tpu_custom_call.1
$region0: #{tpu_custom_call.1}
  #allocation0 [shape = 'u32[]', space=smem, size = 0x4, offset = 0x4, fixed_abs, tag = 'smem constant byte address 0x4 - core index']
  #allocation1 [shape = 'u32[144,128]{1,0:T(1,128)}', space=vmem, size = 0x12000, scoped, tag = 'internal scratch']
  %s0 = inlined_call_operand.hbm [shape: f32[16,128], index: 0, kind: input, shape index: {}]
  %s1 = inlined_call_operand.hbm [shape: f32[16,128], index: 1, kind: output, shape index: {}]
  %s2 = sld [smem:[#allocation0]]
  $region18: #{tpu_custom_call.1} parent=0
    _
  %s4 = ssub.s32 1, %s2
  %s5 = scalar_select 0, %s4, %s2
  $region1: #{tpu_custom_call.1} parent=0
    #allocation2 [shape = 'u8[8192]{0}', space=vmem, size = 0x2000, scoped, tag = 'input window, operand 0, single buffered']
    #allocation3 [shape = 's32[1]{0}', space=sflag, size = 0x4, scoped, tag = 'scoped memory for tpu_custom_call.1']
    #allocation4 [shape = 's32[1]{0}', space=sflag, size = 0x4, scoped, tag = 'scoped memory for tpu_custom_call.1']
    #allocation5 [shape = 'u8[8192]{0}', space=vmem, size = 0x2000, scoped, tag = 'output window, operand 0, single buffered']
    %6 = vsyncpa [#allocation3], 0
    %7 = vsyncpa [#allocation4], 0
    // Predicated region
    $region2: #{tpu_custom_call.1} parent=1 // pred_check
      _
    $region3: #{tpu_custom_call.1} parent=1 // pred_check_branch
      %9 = sbr.rel (0) target = $region5
    $region4: #{tpu_custom_call.1} parent=1 // pred_region
      %s11 = ssub.s32 256, 256
      %12 = vsyncadd [#allocation3], %s11
      %s13 = sshll.u32 [#allocation2], 4
      %s14 = int_to_ptr.vmem [resolvable:$true] %s13
      %19 = dma.hbm_to_vmem [thread:$0]  %s0, 256, %s14, [#allocation3], 128, 128, 8
    $region5: #{tpu_custom_call.1} parent=1 // pred_fallthru
      _
    // Predicated region
    $region6: #{tpu_custom_call.1} parent=1 // pred_check
      _
    $region7: #{tpu_custom_call.1} parent=1 // pred_check_branch
      %21 = sbr.rel (0) target = $region9
    $region8: #{tpu_custom_call.1} parent=1 // pred_region
      %22 = dma.done [#allocation3], 256
    $region9: #{tpu_custom_call.1} parent=1 // pred_fallthru
      _
    %v23 = vld [vmem:[#allocation2] sm:$0xff]
    %v24 = vld [vmem:[#allocation2 + $0x8] sm:$0xff]
    %v25 = vmin.f32 %v23, 20.0
    %v26 = vmin.f32 %v24, 20.0
    %v27 = vmul.f32 %v25, 1.442695
    %v28 = vpow.pop %v27
    %v29 = vmul.f32 %v26, 1.442695
    %v30 = vpow.pop %v29
    %v31 = vadd.f32 %v28, 2.0
    %v32 = vadd.f32 %v30, 2.0
    %v33 = vmul.f32 %v28, %v31
    %v34 = vmul.f32 %v30, %v32
    %v35 = vadd.f32 %v33, 2.0
    %v36 = vadd.f32 %v34, 2.0
    %v37 = vrcp.pop %v35
    %v38 = vmul.f32 %v33, %v37
    %v39 = vrcp.pop %v36
    %v40 = vmul.f32 %v34, %v39
    %v41 = vmul.f32 %v23, %v38
    %v42 = vmul.f32 %v24, %v40
    %43 = vst [vmem:[#allocation5] sm:$0xff] %v41
    %44 = vst [vmem:[#allocation5 + $0x8] sm:$0xff] %v42
    // Predicated region
    $region10: #{tpu_custom_call.1} parent=1 // pred_check
      _
    $region11: #{tpu_custom_call.1} parent=1 // pred_check_branch
      %46 = sbr.rel (0) target = $region13
    $region12: #{tpu_custom_call.1} parent=1 // pred_region
      %s48 = ssub.s32 256, 256
      %49 = vsyncadd [#allocation4], %s48
      %s50 = sshll.u32 [#allocation5], 4
      %s51 = int_to_ptr.vmem [resolvable:$true] %s50
      %56 = dma.vmem_to_hbm [thread:$0]  %s51, 256, %s1, [#allocation4], 128, 128, 8
    $region13: #{tpu_custom_call.1} parent=1 // pred_fallthru
      _
    // Predicated region
    $region14: #{tpu_custom_call.1} parent=1 // pred_check
      _
    $region15: #{tpu_custom_call.1} parent=1 // pred_check_branch
      %58 = sbr.rel (0) target = $region17
    $region16: #{tpu_custom_call.1} parent=1 // pred_region
      %59 = dma.done [#allocation4], 256
    $region17: #{tpu_custom_call.1} parent=1 // pred_fallthru
      _
    %60 = vsyncpa [#allocation3], 1
    %61 = vsyncpa [#allocation4], 1

</llo_original>
